<compile_context>
chip_gen: v6e
topology: v6e:2x2x1
jax: 0.10.0
libtpu: 0.0.40
codegen_flags: <defaults>
</compile_context>

<pallas_src>
import math

import jax
import jax.numpy as jnp
from jax.experimental import pallas as pl
from jax.experimental.pallas import tpu as pltpu


# ----------------------------------------------------------------------------- kernel

def _nei_att_kernel(nei_ref, scores_ref, h_ref, out_ref):
    f32 = jnp.float32
    idx = nei_ref[...]                              # [Tn, S] int32 neighbor ids
    scores = scores_ref[...].astype(f32)            # [Tn, S] pre-activation logits

    tn, s = idx.shape
    m = h_ref.shape[0]

    # LeakyReLU (torch nn.LeakyReLU default negative_slope = 0.01)
    logits = jnp.where(scores >= 0, scores, 0.01 * scores)

    # softmax over the neighbor-sample axis (dim=1 in torch), packed [Tn, S]
    mx = jnp.max(logits, axis=-1, keepdims=True)
    ex = jnp.exp(logits - mx)
    den = jnp.sum(ex, axis=-1, keepdims=True)
    p = ex * pl.reciprocal(den, approx=True)        # EUP slot; replaces S divides

    # A[n, m] = sum_s p[n, s] * onehot(idx[n, s])[m]   ->   out = A @ h
    # Each one-hot is consumed immediately, so only one [Tn, M] temp is live.
    # (S is small & static; for S >~ 8 switch to lax.fori_loop(unroll=True).)
    col = jax.lax.broadcasted_iota(jnp.int32, (tn, m), 1)      # [Tn, M]
    a_mat = jnp.zeros((tn, m), dtype=f32)
    for si in range(s):
        e = (idx[:, si:si + 1] == col).astype(f32)             # [Tn, M] one-hot rows
        a_mat = a_mat + p[:, si:si + 1] * e

    # bf16 x bf16 MXU matmul (native rate), f32 accumulation.
    out = jnp.dot(a_mat.astype(h_ref.dtype), h_ref[...],
                  preferred_element_type=f32)                  # [Tn, D]
    out_ref[...] = out.astype(out_ref.dtype)


# ----------------------------------------------------------------------------- wrapper

def _default_vmem_limit():
    """Per-generation VMEM cap: ~48 MiB on v7x (64 MiB/TC), ~96 MiB on v5e/v6e."""
    cap = 64 * 1024 * 1024            # conservative default (v7x per-TensorCore)
    try:
        cap = int(pltpu.get_tpu_info().vmem_capacity_bytes)
    except Exception:
        pass
    return max(32 * 1024 * 1024, min(96 * 1024 * 1024, (cap * 3) // 4))


def _pick_tile_n(n, s, m, d, vmem_budget_bytes, h_itemsize):
    """Largest node tile whose per-step working set fits, keeping >= ~8 grid steps."""
    resident = m * d * h_itemsize                    # neighbor table, single-buffered
    if resident > vmem_budget_bytes:
        # TODO(synk): large-M path (row-gather BlockSpec / manual DMA) not implemented.
        raise ValueError(
            f"neighbor table ({resident} B) exceeds the VMEM budget "
            f"({vmem_budget_bytes} B); use a gather-based kernel for large M")

    def need(t):
        streamed = 2 * (t * s * 4 + t * s * 4 + t * d * 4)      # nei + scores + out, 2 bufs
        temps = 2 * t * m * 4 + 4 * t * s * 4 + 2 * t * d * 4   # one-hot/a_mat + f32 temps
        return resident + streamed + temps

    t = 1024
    while t > 8 and need(t) > vmem_budget_bytes:
        t //= 2
    if n >= 64:
        # keep >= ~8 grid steps: pipeline overlap + v7x 2-TensorCore "parallel" split
        t = min(t, max(8, ((n // 8) // 8) * 8))
    return max(8, min(t, n))


def nei_att_forward(nei, h, h_refer, att, *, tile_n=None, vmem_limit_bytes=None,
                    use_bf16_mxu=True):
    """Pallas nei_att forward. nei:[N,S] int, h:[M,D], h_refer:[N,D], att:[1,2D]."""
    n, s = nei.shape
    m, d = h.shape
    assert h_refer.shape == (n, d)
    assert att.shape == (1, 2 * d)

    att_f = att.astype(jnp.float32)
    a_self, a_nei = att_f[0, :d], att_f[0, d:]

    # Hoisted score path (cheap XLA matvecs + gather); stays f32-exact.
    hproj = h.astype(jnp.float32) @ a_nei                                   # [M]
    scores = (jnp.take(hproj, nei, axis=0)
              + (h_refer.astype(jnp.float32) @ a_self)[:, None])            # [N, S]
    scores = scores.astype(jnp.float32)

    nei_p = nei.astype(jnp.int32)
    # Neighbor table in bf16: half the HBM traffic / VMEM residency, native MXU rate.
    h_tab = h.astype(jnp.bfloat16) if use_bf16_mxu else h

    if vmem_limit_bytes is None:
        vmem_limit_bytes = _default_vmem_limit()
    if tile_n is None:
        tile_n = _pick_tile_n(n, s, m, d, (vmem_limit_bytes * 3) // 4,
                              jnp.dtype(h_tab.dtype).itemsize)

    if tile_n >= n:
        tile_n, n_pad = n, n
    else:
        tile_n = max(8, (tile_n // 8) * 8)            # sublane dim multiple of 8
        n_pad = pl.cdiv(n, tile_n) * tile_n
        if n_pad != n:                                # padded rows gather row 0, sliced off
            nei_p = jnp.pad(nei_p, ((0, n_pad - n), (0, 0)))
            scores = jnp.pad(scores, ((0, n_pad - n), (0, 0)))
    grid = (n_pad // tile_n,)

    def _call(resident_spec):
        return pl.pallas_call(
            _nei_att_kernel,
            out_shape=jax.ShapeDtypeStruct((n_pad, d), jnp.float32),
            grid=grid,
            in_specs=[
                pl.BlockSpec((tile_n, s), lambda i: (i, 0)),   # neighbor ids, streamed
                pl.BlockSpec((tile_n, s), lambda i: (i, 0)),   # pre-activation scores, streamed
                resident_spec,                                 # neighbor table, resident
            ],
            out_specs=pl.BlockSpec((tile_n, d), lambda i: (i, 0)),
            compiler_params=pltpu.CompilerParams(
                dimension_semantics=("parallel",),             # node tiles across TensorCores
                vmem_limit_bytes=vmem_limit_bytes,
            ),
        )(nei_p, scores, h_tab)

    try:
        # Grid-invariant table: single-buffered (constant index_map -> DMA'd once).
        out = _call(pl.BlockSpec((m, d), lambda i: (0, 0), pipeline_mode=pl.Buffered(1)))
    except Exception:
        # Fallback if single-buffering is rejected by this JAX/Mosaic version.
        out = _call(pl.BlockSpec((m, d), lambda i: (0, 0)))
    return out[:n]


# ----------------------------------------------------------------------------- reference

def nei_att_reference(nei, h, h_refer, att):
    d = h.shape[-1]
    nei_emb = jnp.take(h, nei, axis=0)                                  # [N, S, D]
    logits = nei_emb @ att[0, d:] + (h_refer @ att[0, :d])[:, None]     # [N, S]
    logits = jnp.where(logits >= 0, logits, 0.01 * logits)
    p = jax.nn.softmax(logits, axis=1)
    return jnp.sum(p[..., None] * nei_emb, axis=1)                      # [N, D]


# ----------------------------------------------------------------------------- main

def xavier_normal(key, shape, gain=1.414):
    fan_out, fan_in = shape
    std = gain * math.sqrt(2.0 / (fan_in + fan_out))
    return std * jax.random.normal(key, shape, dtype=jnp.float32)


if __name__ == "__main__":
    key = jax.random.PRNGKey(0)
    hidden_dim = 128     # lane-dense output (multiple of 128) -> unmasked vector stores
    n_nodes = 256        # reference nodes
    pool = 64            # rows in the neighbor feature table h
    samples = 4          # neighbors sampled per reference node

    k1, k2, k3, k4 = jax.random.split(key, 4)
    h = jax.random.normal(k1, (pool, hidden_dim), dtype=jnp.float32)
    h_refer = jax.random.normal(k2, (n_nodes, hidden_dim), dtype=jnp.float32)
    nei = jax.random.randint(k3, (n_nodes, samples), 0, pool, dtype=jnp.int32)
    att = xavier_normal(k4, (1, 2 * hidden_dim))

    out = jax.block_until_ready(nei_att_forward(nei, h, h_refer, att))   # grid = (8,)
    ref = jax.block_until_ready(nei_att_reference(nei, h, h_refer, att))

    assert out.shape == (n_nodes, hidden_dim) and out.dtype == jnp.float32
    err = float(jnp.max(jnp.abs(out - ref)))
    assert err < 5e-2, f"max abs error vs reference too large: {err}"
    print("KERNEL_OK")
</pallas_src>

<mosaic_0001>
module attributes {stable_mosaic.version = 11 : i64} {
  func.func @_nei_att_kernel(%arg0: i32, %arg1: memref<32x4xi32, #tpu.memory_space<vmem>>, %arg2: memref<32x4xf32, #tpu.memory_space<vmem>>, %arg3: memref<64x128xbf16, #tpu.memory_space<vmem>>, %arg4: memref<32x128xf32, #tpu.memory_space<vmem>>) attributes {dimension_semantics = [#tpu.dimension_semantics<parallel>], iteration_bounds = array<i64: 8>, scalar_prefetch = 0 : i64, scratch_operands = 0 : i64, tpu.core_type = #tpu.core_type<tc>, window_params = [{transform_indices = @transform_0, window_bounds = array<i64: 32, 4>}, {transform_indices = @transform_1, window_bounds = array<i64: 32, 4>}, {pipeline_mode = #tpu.pipeline_mode<synchronous>, transform_indices = @transform_2, window_bounds = array<i64: 64, 128>}, {transform_indices = @transform_3, window_bounds = array<i64: 32, 128>}]} {
    %c0 = arith.constant 0 : index
    %c0_0 = arith.constant 0 : index
    %0 = vector.load %arg1[%c0, %c0_0] : memref<32x4xi32, #tpu.memory_space<vmem>>, vector<32x4xi32>
    %c0_1 = arith.constant 0 : index
    %c0_2 = arith.constant 0 : index
    %1 = vector.load %arg2[%c0_1, %c0_2] : memref<32x4xf32, #tpu.memory_space<vmem>>, vector<32x4xf32>
    %cst = arith.constant 0.000000e+00 : f32
    %2 = vector.broadcast %cst : f32 to vector<32x4xf32>
    %3 = arith.cmpf oge, %1, %2 : vector<32x4xf32>
    %cst_3 = arith.constant 0.00999999977 : f32
    %4 = vector.broadcast %cst_3 : f32 to vector<32x4xf32>
    %5 = arith.mulf %4, %1 : vector<32x4xf32>
    %6 = arith.select %3, %1, %5 : vector<32x4xi1>, vector<32x4xf32>
    %cst_4 = arith.constant dense<0xFF800000> : vector<32xf32>
    %7 = vector.multi_reduction <maximumf>, %6, %cst_4 [1] : vector<32x4xf32> to vector<32xf32>
    %8 = vector.shape_cast %7 : vector<32xf32> to vector<32x1xf32>
    %9 = vector.broadcast %8 : vector<32x1xf32> to vector<32x4xf32>
    %10 = arith.subf %6, %9 : vector<32x4xf32>
    %11 = math.exp %10 : vector<32x4xf32>
    %cst_5 = arith.constant dense<0.000000e+00> : vector<32xf32>
    %12 = vector.multi_reduction <add>, %11, %cst_5 [1] : vector<32x4xf32> to vector<32xf32>
    %13 = vector.shape_cast %12 : vector<32xf32> to vector<32x1xf32>
    %14 = tpu.reciprocal %13 {approx = true} : vector<32x1xf32> -> vector<32x1xf32>
    %15 = vector.broadcast %14 : vector<32x1xf32> to vector<32x4xf32>
    %16 = arith.mulf %11, %15 : vector<32x4xf32>
    %17 = tpu.iota {dimensions = array<i32: 1>} : vector<32x64xi32>
    %cst_6 = arith.constant 0.000000e+00 : f32
    %18 = vector.broadcast %cst_6 : f32 to vector<32x64xf32>
    %19 = vector.extract_strided_slice %0 {offsets = [0, 0], sizes = [32, 1], strides = [1, 1]} : vector<32x4xi32> to vector<32x1xi32>
    %20 = vector.broadcast %19 : vector<32x1xi32> to vector<32x64xi32>
    %21 = arith.cmpi eq, %20, %17 : vector<32x64xi32>
    %22 = arith.extui %21 : vector<32x64xi1> to vector<32x64xi32>
    %23 = arith.sitofp %22 : vector<32x64xi32> to vector<32x64xf32>
    %24 = vector.extract_strided_slice %16 {offsets = [0, 0], sizes = [32, 1], strides = [1, 1]} : vector<32x4xf32> to vector<32x1xf32>
    %25 = vector.broadcast %24 : vector<32x1xf32> to vector<32x64xf32>
    %26 = arith.mulf %25, %23 : vector<32x64xf32>
    %27 = arith.addf %18, %26 : vector<32x64xf32>
    %28 = vector.extract_strided_slice %0 {offsets = [0, 1], sizes = [32, 1], strides = [1, 1]} : vector<32x4xi32> to vector<32x1xi32>
    %29 = vector.broadcast %28 : vector<32x1xi32> to vector<32x64xi32>
    %30 = arith.cmpi eq, %29, %17 : vector<32x64xi32>
    %31 = arith.extui %30 : vector<32x64xi1> to vector<32x64xi32>
    %32 = arith.sitofp %31 : vector<32x64xi32> to vector<32x64xf32>
    %33 = vector.extract_strided_slice %16 {offsets = [0, 1], sizes = [32, 1], strides = [1, 1]} : vector<32x4xf32> to vector<32x1xf32>
    %34 = vector.broadcast %33 : vector<32x1xf32> to vector<32x64xf32>
    %35 = arith.mulf %34, %32 : vector<32x64xf32>
    %36 = arith.addf %27, %35 : vector<32x64xf32>
    %37 = vector.extract_strided_slice %0 {offsets = [0, 2], sizes = [32, 1], strides = [1, 1]} : vector<32x4xi32> to vector<32x1xi32>
    %38 = vector.broadcast %37 : vector<32x1xi32> to vector<32x64xi32>
    %39 = arith.cmpi eq, %38, %17 : vector<32x64xi32>
    %40 = arith.extui %39 : vector<32x64xi1> to vector<32x64xi32>
    %41 = arith.sitofp %40 : vector<32x64xi32> to vector<32x64xf32>
    %42 = vector.extract_strided_slice %16 {offsets = [0, 2], sizes = [32, 1], strides = [1, 1]} : vector<32x4xf32> to vector<32x1xf32>
    %43 = vector.broadcast %42 : vector<32x1xf32> to vector<32x64xf32>
    %44 = arith.mulf %43, %41 : vector<32x64xf32>
    %45 = arith.addf %36, %44 : vector<32x64xf32>
    %46 = vector.extract_strided_slice %0 {offsets = [0, 3], sizes = [32, 1], strides = [1, 1]} : vector<32x4xi32> to vector<32x1xi32>
    %47 = vector.broadcast %46 : vector<32x1xi32> to vector<32x64xi32>
    %48 = arith.cmpi eq, %47, %17 : vector<32x64xi32>
    %49 = arith.extui %48 : vector<32x64xi1> to vector<32x64xi32>
    %50 = arith.sitofp %49 : vector<32x64xi32> to vector<32x64xf32>
    %51 = vector.extract_strided_slice %16 {offsets = [0, 3], sizes = [32, 1], strides = [1, 1]} : vector<32x4xf32> to vector<32x1xf32>
    %52 = vector.broadcast %51 : vector<32x1xf32> to vector<32x64xf32>
    %53 = arith.mulf %52, %50 : vector<32x64xf32>
    %54 = arith.addf %45, %53 : vector<32x64xf32>
    %55 = arith.truncf %54 : vector<32x64xf32> to vector<32x64xbf16>
    %c0_7 = arith.constant 0 : index
    %c0_8 = arith.constant 0 : index
    %56 = vector.load %arg3[%c0_7, %c0_8] : memref<64x128xbf16, #tpu.memory_space<vmem>>, vector<64x128xbf16>
    %cst_9 = arith.constant dense<0.000000e+00> : vector<32x128xf32>
    %57 = tpu.matmul %55, %56, %cst_9 {dimension_numbers = #tpu.dot_dimension_numbers<[1], [0], [0], [1], [0, 0, 1, 1], [], []>} : vector<32x64xbf16>, vector<64x128xbf16>, vector<32x128xf32> -> vector<32x128xf32>
    %c0_10 = arith.constant 0 : index
    %c0_11 = arith.constant 0 : index
    %58 = vector.load %arg4[%c0_10, %c0_11] : memref<32x128xf32, #tpu.memory_space<vmem>>, vector<32x128xf32>
    tpu.vector_store %arg4[%c0_10, %c0_11], %57 {strides = array<i32>} : memref<32x128xf32, #tpu.memory_space<vmem>>, vector<32x128xf32>,
    return
  }
  func.func @transform_0(%arg0: i32) -> (i32, i32) {
    %c0_i32 = arith.constant 0 : i32
    %c0_i32_0 = arith.constant 0 : i32
    return %arg0, %c0_i32 : i32, i32
  }
  func.func @transform_1(%arg0: i32) -> (i32, i32) {
    %c0_i32 = arith.constant 0 : i32
    %c0_i32_0 = arith.constant 0 : i32
    return %arg0, %c0_i32 : i32, i32
  }
  func.func @transform_2(%arg0: i32) -> (i32, i32) {
    %c0_i32 = arith.constant 0 : i32
    %c0_i32_0 = arith.constant 0 : i32
    %c0_i32_1 = arith.constant 0 : i32
    return %c0_i32, %c0_i32_0 : i32, i32
  }
  func.func @transform_3(%arg0: i32) -> (i32, i32) {
    %c0_i32 = arith.constant 0 : i32
    %c0_i32_0 = arith.constant 0 : i32
    return %arg0, %c0_i32 : i32, i32
  }
}

module attributes {stable_mosaic.version = 11 : i64} {
  func.func @_nei_att_kernel(%arg0: i32, %arg1: memref<32x4xi32, #tpu.memory_space<vmem>>, %arg2: memref<32x4xf32, #tpu.memory_space<vmem>>, %arg3: memref<64x128xbf16, #tpu.memory_space<vmem>>, %arg4: memref<32x128xf32, #tpu.memory_space<vmem>>) attributes {dimension_semantics = [#tpu.dimension_semantics<parallel>], iteration_bounds = array<i64: 8>, scalar_prefetch = 0 : i64, scratch_operands = 0 : i64, tpu.core_type = #tpu.core_type<tc>, window_params = [{transform_indices = @transform_0, window_bounds = array<i64: 32, 4>}, {transform_indices = @transform_1, window_bounds = array<i64: 32, 4>}, {pipeline_mode = #tpu.pipeline_mode<synchronous>, transform_indices = @transform_2, window_bounds = array<i64: 64, 128>}, {transform_indices = @transform_3, window_bounds = array<i64: 32, 128>}]} {
    %c0 = arith.constant 0 : index
    %c0_0 = arith.constant 0 : index
    %0 = vector.load %arg1[%c0, %c0_0] : memref<32x4xi32, #tpu.memory_space<vmem>>, vector<32x4xi32>
    %c0_1 = arith.constant 0 : index
    %c0_2 = arith.constant 0 : index
    %1 = vector.load %arg2[%c0_1, %c0_2] : memref<32x4xf32, #tpu.memory_space<vmem>>, vector<32x4xf32>
    %cst = arith.constant 0.000000e+00 : f32
    %2 = vector.broadcast %cst : f32 to vector<32x4xf32>
    %3 = arith.cmpf oge, %1, %2 : vector<32x4xf32>
    %cst_3 = arith.constant 0.00999999977 : f32
    %4 = vector.broadcast %cst_3 : f32 to vector<32x4xf32>
    %5 = arith.mulf %4, %1 : vector<32x4xf32>
    %6 = arith.select %3, %1, %5 : vector<32x4xi1>, vector<32x4xf32>
    %cst_4 = arith.constant dense<0xFF800000> : vector<32xf32>
    %7 = vector.multi_reduction <maximumf>, %6, %cst_4 [1] : vector<32x4xf32> to vector<32xf32>
    %8 = vector.shape_cast %7 : vector<32xf32> to vector<32x1xf32>
    %9 = vector.broadcast %8 : vector<32x1xf32> to vector<32x4xf32>
    %10 = arith.subf %6, %9 : vector<32x4xf32>
    %11 = math.exp %10 : vector<32x4xf32>
    %cst_5 = arith.constant dense<0.000000e+00> : vector<32xf32>
    %12 = vector.multi_reduction <add>, %11, %cst_5 [1] : vector<32x4xf32> to vector<32xf32>
    %13 = vector.shape_cast %12 : vector<32xf32> to vector<32x1xf32>
    %14 = tpu.reciprocal %13 {approx = true} : vector<32x1xf32> -> vector<32x1xf32>
    %15 = vector.broadcast %14 : vector<32x1xf32> to vector<32x4xf32>
    %16 = arith.mulf %11, %15 : vector<32x4xf32>
    %17 = tpu.iota {dimensions = array<i32: 1>} : vector<32x64xi32>
    %cst_6 = arith.constant 0.000000e+00 : f32
    %18 = vector.broadcast %cst_6 : f32 to vector<32x64xf32>
    %19 = vector.extract_strided_slice %0 {offsets = [0, 0], sizes = [32, 1], strides = [1, 1]} : vector<32x4xi32> to vector<32x1xi32>
    %20 = vector.broadcast %19 : vector<32x1xi32> to vector<32x64xi32>
    %21 = arith.cmpi eq, %20, %17 : vector<32x64xi32>
    %22 = arith.extui %21 : vector<32x64xi1> to vector<32x64xi32>
    %23 = arith.sitofp %22 : vector<32x64xi32> to vector<32x64xf32>
    %24 = vector.extract_strided_slice %16 {offsets = [0, 0], sizes = [32, 1], strides = [1, 1]} : vector<32x4xf32> to vector<32x1xf32>
    %25 = vector.broadcast %24 : vector<32x1xf32> to vector<32x64xf32>
    %26 = arith.mulf %25, %23 : vector<32x64xf32>
    %27 = arith.addf %18, %26 : vector<32x64xf32>
    %28 = vector.extract_strided_slice %0 {offsets = [0, 1], sizes = [32, 1], strides = [1, 1]} : vector<32x4xi32> to vector<32x1xi32>
    %29 = vector.broadcast %28 : vector<32x1xi32> to vector<32x64xi32>
    %30 = arith.cmpi eq, %29, %17 : vector<32x64xi32>
    %31 = arith.extui %30 : vector<32x64xi1> to vector<32x64xi32>
    %32 = arith.sitofp %31 : vector<32x64xi32> to vector<32x64xf32>
    %33 = vector.extract_strided_slice %16 {offsets = [0, 1], sizes = [32, 1], strides = [1, 1]} : vector<32x4xf32> to vector<32x1xf32>
    %34 = vector.broadcast %33 : vector<32x1xf32> to vector<32x64xf32>
    %35 = arith.mulf %34, %32 : vector<32x64xf32>
    %36 = arith.addf %27, %35 : vector<32x64xf32>
    %37 = vector.extract_strided_slice %0 {offsets = [0, 2], sizes = [32, 1], strides = [1, 1]} : vector<32x4xi32> to vector<32x1xi32>
    %38 = vector.broadcast %37 : vector<32x1xi32> to vector<32x64xi32>
    %39 = arith.cmpi eq, %38, %17 : vector<32x64xi32>
    %40 = arith.extui %39 : vector<32x64xi1> to vector<32x64xi32>
    %41 = arith.sitofp %40 : vector<32x64xi32> to vector<32x64xf32>
    %42 = vector.extract_strided_slice %16 {offsets = [0, 2], sizes = [32, 1], strides = [1, 1]} : vector<32x4xf32> to vector<32x1xf32>
    %43 = vector.broadcast %42 : vector<32x1xf32> to vector<32x64xf32>
    %44 = arith.mulf %43, %41 : vector<32x64xf32>
    %45 = arith.addf %36, %44 : vector<32x64xf32>
    %46 = vector.extract_strided_slice %0 {offsets = [0, 3], sizes = [32, 1], strides = [1, 1]} : vector<32x4xi32> to vector<32x1xi32>
    %47 = vector.broadcast %46 : vector<32x1xi32> to vector<32x64xi32>
    %48 = arith.cmpi eq, %47, %17 : vector<32x64xi32>
    %49 = arith.extui %48 : vector<32x64xi1> to vector<32x64xi32>
    %50 = arith.sitofp %49 : vector<32x64xi32> to vector<32x64xf32>
    %51 = vector.extract_strided_slice %16 {offsets = [0, 3], sizes = [32, 1], strides = [1, 1]} : vector<32x4xf32> to vector<32x1xf32>
    %52 = vector.broadcast %51 : vector<32x1xf32> to vector<32x64xf32>
    %53 = arith.mulf %52, %50 : vector<32x64xf32>
    %54 = arith.addf %45, %53 : vector<32x64xf32>
    %55 = arith.truncf %54 : vector<32x64xf32> to vector<32x64xbf16>
    %c0_7 = arith.constant 0 : index
    %c0_8 = arith.constant 0 : index
    %56 = vector.load %arg3[%c0_7, %c0_8] : memref<64x128xbf16, #tpu.memory_space<vmem>>, vector<64x128xbf16>
    %cst_9 = arith.constant dense<0.000000e+00> : vector<32x128xf32>
    %57 = tpu.matmul %55, %56, %cst_9 {dimension_numbers = #tpu.dot_dimension_numbers<[1], [0], [0], [1], [0, 0, 1, 1], [], []>} : vector<32x64xbf16>, vector<64x128xbf16>, vector<32x128xf32> -> vector<32x128xf32>
    %c0_10 = arith.constant 0 : index
    %c0_11 = arith.constant 0 : index
    %58 = vector.load %arg4[%c0_10, %c0_11] : memref<32x128xf32, #tpu.memory_space<vmem>>, vector<32x128xf32>
    tpu.vector_store %arg4[%c0_10, %c0_11], %57 {strides = array<i32>} : memref<32x128xf32, #tpu.memory_space<vmem>>, vector<32x128xf32>,
    return
  }
  func.func @transform_0(%arg0: i32) -> (i32, i32) {
    %c0_i32 = arith.constant 0 : i32
    %c0_i32_0 = arith.constant 0 : i32
    return %arg0, %c0_i32 : i32, i32
  }
  func.func @transform_1(%arg0: i32) -> (i32, i32) {
    %c0_i32 = arith.constant 0 : i32
    %c0_i32_0 = arith.constant 0 : i32
    return %arg0, %c0_i32 : i32, i32
  }
  func.func @transform_2(%arg0: i32) -> (i32, i32) {
    %c0_i32 = arith.constant 0 : i32
    %c0_i32_0 = arith.constant 0 : i32
    %c0_i32_1 = arith.constant 0 : i32
    return %c0_i32, %c0_i32_0 : i32, i32
  }
  func.func @transform_3(%arg0: i32) -> (i32, i32) {
    %c0_i32 = arith.constant 0 : i32
    %c0_i32_0 = arith.constant 0 : i32
    return %arg0, %c0_i32 : i32, i32
  }
}

</mosaic_0001>

<llo_original>
// kernel: tpu_custom_call.1
$region0: #{tpu_custom_call.1}
  #allocation0 [shape = 'u32[]', space=smem, size = 0x4, offset = 0x4, fixed_abs, tag = 'smem constant byte address 0x4 - core index']
  #allocation1 [shape = 'u32[144,128]{1,0:T(1,128)}', space=vmem, size = 0x12000, scoped, tag = 'internal scratch']
  %s0 = inlined_call_operand.vmem [shape: s32[256,4], index: 0, kind: input, shape index: {}]
  %s1 = inlined_call_operand.vmem [shape: f32[256,4], index: 1, kind: input, shape index: {}]
  %s2 = inlined_call_operand.vmem [shape: bf16[64,128], index: 2, kind: input, shape index: {}]
  %s3 = inlined_call_operand.hbm [shape: f32[256,128], index: 3, kind: output, shape index: {}]
  %s4 = sld [smem:[#allocation0]]
  $region45: #{tpu_custom_call.1} parent=0
    _
  %s6 = ssub.s32 1, %s4
  %s7 = scalar_select 0, %s6, %s4
  $region1: #{tpu_custom_call.1} parent=0
    #allocation2 [shape = 'u8[32768]{0}', space=vmem, size = 0x8000, scoped, tag = 'output window, operand 0']
    #allocation3 [shape = 's32[2]{0}', space=sflag, size = 0x8, scoped, tag = 'scoped memory for tpu_custom_call.1']
    %8 = vsyncpa [#allocation3], 0
    %s9 = scalar_lea.sflag [#allocation3], 1
    %10 = vsyncpa %s9, 0
    loop: start=0, step=1, limit=10
    $region2: #{tpu_custom_call.1} parent=1 // loop_pre_header
      _
    $region3: #{tpu_custom_call.1} parent=1 // loop_header
      %s12 = sphi 0, %s16
      %p13 = scmp.ge.s32.totalorder %s12, 10
      %s22 = sphi 0, %s24
      %s25 = sphi 0, %s22
      %s26 = sphi 0, %s25
      %s42 = sphi 0, %s26
      %s48 = sphi 0, %s50
      %s51 = sphi 0, %s48
      %s52 = sphi 0, %s51
      %s68 = sphi 0, %s52
      %s72 = sphi 0, %s72
      %s74 = sphi 0, %s72
      %s75 = sphi 0, %s74
      %s89 = sphi 0, %s75
      %s95 = sphi 0, %s97
      %s98 = sphi 0, %s95
      %s99 = sphi 0, %s98
      %s115 = sphi 0, %s99
    $region4: #{tpu_custom_call.1} parent=1 // loop_header_branch
      %15 = sbr.rel (%p13) target = $region8
    $region5: #{tpu_custom_call.1} parent=1 // loop_body
      %s17 = ssub.s32 %s12, 1
      %s18 = ssub.s32 %s12, 2
      %s19 = sadd.s32 %s12, 1
      %s20 = ssub.s32 %s12, %s19
      %p21 = scmp.eq.s32.totalorder %s20, 0
      %s23 = sadd.s32 %s22, 1
      %s24 = scalar_select %p21, %s22, %s23
      %p27 = pneg %p21
      %p28 = scmp.eq.s32.totalorder %s12, 7
      %p29 = por %p27, %p28
      %p30 = scmp.ne.s32.totalorder %s22, %s25
      %p31 = scmp.eq.s32.totalorder %s12, 0
      %p32 = por %p30, %p31
      %p33 = scmp.ne.s32.totalorder %s22, %s25
      %p34 = scmp.eq.s32.totalorder %s17, 7
      %p35 = por %p33, %p34
      %p36 = scmp.ne.s32.totalorder %s25, %s26
      %p37 = scmp.eq.s32.totalorder %s17, 0
      %p38 = por %p36, %p37
      %p39 = scmp.ne.s32.totalorder %s25, %s26
      %p40 = scmp.eq.s32.totalorder %s18, 7
      %p41 = por %p39, %p40
      %p43 = scmp.ne.s32.totalorder %s26, %s42
      %p44 = scmp.eq.s32.totalorder %s18, 0
      %p45 = por %p43, %p44
      %s46 = ssub.s32 %s12, %s19
      %p47 = scmp.eq.s32.totalorder %s46, 0
      %s49 = sadd.s32 %s48, 1
      %s50 = scalar_select %p47, %s48, %s49
      %p53 = pneg %p47
      %p54 = scmp.eq.s32.totalorder %s12, 7
      %p55 = por %p53, %p54
      %p56 = scmp.ne.s32.totalorder %s48, %s51
      %p57 = scmp.eq.s32.totalorder %s12, 0
      %p58 = por %p56, %p57
      %p59 = scmp.ne.s32.totalorder %s48, %s51
      %p60 = scmp.eq.s32.totalorder %s17, 7
      %p61 = por %p59, %p60
      %p62 = scmp.ne.s32.totalorder %s51, %s52
      %p63 = scmp.eq.s32.totalorder %s17, 0
      %p64 = por %p62, %p63
      %p65 = scmp.ne.s32.totalorder %s51, %s52
      %p66 = scmp.eq.s32.totalorder %s18, 7
      %p67 = por %p65, %p66
      %p69 = scmp.ne.s32.totalorder %s52, %s68
      %p70 = scmp.eq.s32.totalorder %s18, 0
      %p71 = por %p69, %p70
      %s73 = sadd.s32 %s72, 1
      %p76 = scmp.eq.s32.totalorder %s12, 7
      %p77 = scmp.ne.s32.totalorder %s72, %s74
      %p78 = scmp.eq.s32.totalorder %s12, 0
      %p79 = por %p77, %p78
      %p80 = scmp.ne.s32.totalorder %s72, %s74
      %p81 = scmp.eq.s32.totalorder %s17, 7
      %p82 = por %p80, %p81
      %p83 = scmp.ne.s32.totalorder %s74, %s75
      %p84 = scmp.eq.s32.totalorder %s17, 0
      %p85 = por %p83, %p84
      %p86 = scmp.ne.s32.totalorder %s74, %s75
      %p87 = scmp.eq.s32.totalorder %s18, 7
      %p88 = por %p86, %p87
      %p90 = scmp.ne.s32.totalorder %s75, %s89
      %p91 = scmp.eq.s32.totalorder %s18, 0
      %p92 = por %p90, %p91
      %s93 = ssub.s32 %s12, %s19
      %p94 = scmp.eq.s32.totalorder %s93, 0
      %s96 = sadd.s32 %s95, 1
      %s97 = scalar_select %p94, %s95, %s96
      %p100 = pneg %p94
      %p101 = scmp.eq.s32.totalorder %s12, 7
      %p102 = por %p100, %p101
      %p103 = scmp.ne.s32.totalorder %s95, %s98
      %p104 = scmp.eq.s32.totalorder %s12, 0
      %p105 = por %p103, %p104
      %p106 = scmp.ne.s32.totalorder %s95, %s98
      %p107 = scmp.eq.s32.totalorder %s17, 7
      %p108 = por %p106, %p107
      %p109 = scmp.ne.s32.totalorder %s98, %s99
      %p110 = scmp.eq.s32.totalorder %s17, 0
      %p111 = por %p109, %p110
      %p112 = scmp.ne.s32.totalorder %s98, %s99
      %p113 = scmp.eq.s32.totalorder %s18, 7
      %p114 = por %p112, %p113
      %p116 = scmp.ne.s32.totalorder %s99, %s115
      %p117 = scmp.eq.s32.totalorder %s18, 0
      %p118 = por %p116, %p117
      %p119 = scmp.le.s32.totalorder 1, %s12
      %p120 = scmp.lt.s32.totalorder %s12, 9
      %p121 = pnand %p119, %p120
      %p122 = pneg %p121
      // Predicated region
      $region9: #{tpu_custom_call.1} parent=5 // pred_check
        _
      $region10: #{tpu_custom_call.1} parent=5 // pred_check_branch
        %124 = sbr.rel (%p121) target = $region12
      $region11: #{tpu_custom_call.1} parent=5 // pred_region
        %s125 = ssub.s32 %s12, 1
        // Predicated region
        $region13: #{tpu_custom_call.1} parent=11 // pred_check
          %p126 = pneg %p85
        $region14: #{tpu_custom_call.1} parent=11 // pred_check_branch
          %128 = sbr.rel (%p126) target = $region16
        $region15: #{tpu_custom_call.1} parent=11 // pred_region
          _
        $region16: #{tpu_custom_call.1} parent=11 // pred_fallthru
          _
      $region12: #{tpu_custom_call.1} parent=5 // pred_fallthru
        _
      %p129 = scmp.lt.s32.totalorder %s12, 8
      // Predicated region
      $region17: #{tpu_custom_call.1} parent=5 // pred_check
        %p130 = pneg %p129
      $region18: #{tpu_custom_call.1} parent=5 // pred_check_branch
        %132 = sbr.rel (%p130) target = $region20
      $region19: #{tpu_custom_call.1} parent=5 // pred_region
        // Predicated region
        $region21: #{tpu_custom_call.1} parent=19 // pred_check
          %p133 = pneg %p32
        $region22: #{tpu_custom_call.1} parent=19 // pred_check_branch
          %135 = sbr.rel (%p133) target = $region24
        $region23: #{tpu_custom_call.1} parent=19 // pred_region
          %s136 = smul.u32 4, %s12
          %p137 = scmp.lt.s32.totalorder %s136, 31
          %s138 = scalar_select %p137, %s136, 31
          %s139 = smul.addr %s138, 8
          %s140 = scalar_lea.vmem %s0, %s139
          %s141 = smul.u32 4, %s12
        $region24: #{tpu_custom_call.1} parent=19 // pred_fallthru
          _
        // Predicated region
        $region25: #{tpu_custom_call.1} parent=19 // pred_check
          %p142 = pneg %p58
        $region26: #{tpu_custom_call.1} parent=19 // pred_check_branch
          %144 = sbr.rel (%p142) target = $region28
        $region27: #{tpu_custom_call.1} parent=19 // pred_region
          %s145 = smul.u32 4, %s12
          %p146 = scmp.lt.s32.totalorder %s145, 31
          %s147 = scalar_select %p146, %s145, 31
          %s148 = smul.addr %s147, 8
          %s149 = scalar_lea.vmem %s1, %s148
          %s150 = smul.u32 4, %s12
        $region28: #{tpu_custom_call.1} parent=19 // pred_fallthru
          _
      $region20: #{tpu_custom_call.1} parent=5 // pred_fallthru
        _
      %p151 = scmp.le.s32.totalorder 1, %s12
      %p152 = scmp.lt.s32.totalorder %s12, 9
      %p153 = pnand %p151, %p152
      %p154 = pneg %p153
      // Predicated region
      $region29: #{tpu_custom_call.1} parent=5 // pred_check
        _
      $region30: #{tpu_custom_call.1} parent=5 // pred_check_branch
        %156 = sbr.rel (%p153) target = $region32
      $region31: #{tpu_custom_call.1} parent=5 // pred_region
        %s157 = ssub.s32 %s12, 1
        %s158 = smul.u32 4, %s17
        %p159 = scmp.lt.s32.totalorder %s158, 31
        %s160 = scalar_select %p159, %s158, 31
        %s161 = smul.addr %s160, 8
        %s162 = scalar_lea.vmem %s0, %s161
        %p163 = pneg %p38
        %p164 = pneg %p35
        %s165 = smul.u32 4, %s17
        %p166 = scmp.lt.s32.totalorder %s165, 31
        %s167 = scalar_select %p166, %s165, 31
        %s168 = smul.addr %s167, 8
        %s169 = scalar_lea.vmem %s1, %s168
        %p170 = pneg %p64
        %p171 = pneg %p61
        %p172 = pneg %p85
        %p173 = pneg %p82
        %p174 = pneg %p111
        %p175 = pneg %p108
        %s176 = sand.u32 %s98, 1
        %s177 = scalar_lea.sflag [#allocation3], %s176
        %s178 = sand.u32 %s98, 1
        %s179 = smul.addr %s178, 32
        %s180 = scalar_lea.vmem [#allocation2], %s179
        %s181 = smul.u32 4, %s17
        %p182 = scmp.lt.s32.totalorder %s181, 31
        %s183 = scalar_select %p182, %s181, 31
        %s184 = smul.addr %s183, 8
        %s185 = scalar_lea.vmem %s0, %s184
        %s186 = smul.u32 4, %s17
        %s187 = smul.u32 4, %s17
        %p188 = scmp.lt.s32.totalorder %s187, 31
        %s189 = scalar_select %p188, %s187, 31
        %s190 = smul.addr %s189, 8
        %s191 = scalar_lea.vmem %s1, %s190
        %s192 = smul.u32 4, %s17
        %s193 = smul.u32 4, %s17
        %v195 = vld [vmem:[%s185] sm:$0xff]
        %v196 = vld [vmem:[%s185 + $0x8] sm:$0xff]
        %v197 = vld [vmem:[%s185 + $0x10] sm:$0xff]
        %v198 = vld [vmem:[%s185 + $0x18] sm:$0xff]
        %v199 = vld [vmem:[%s191] sm:$0xff]
        %v200 = vld [vmem:[%s191 + $0x8] sm:$0xff]
        %v201 = vld [vmem:[%s191 + $0x10] sm:$0xff]
        %v202 = vld [vmem:[%s191 + $0x18] sm:$0xff]
        %vm203 = vcmp.ge.f32.partialorder %v199, 0.0
        %vm204 = vcmp.ge.f32.partialorder %v200, 0.0
        %vm205 = vcmp.ge.f32.partialorder %v201, 0.0
        %vm206 = vcmp.ge.f32.partialorder %v202, 0.0
        %v207 = vmul.f32 %v199, 0.01
        %v208 = vmul.f32 %v200, 0.01
        %v209 = vmul.f32 %v201, 0.01
        %v210 = vmul.f32 %v202, 0.01
        %v211 = vsel %vm203, %v199, %v207
        %v212 = vsel %vm204, %v200, %v208
        %v213 = vsel %vm205, %v201, %v209
        %v214 = vsel %vm206, %v202, %v210
        %vm215 = vcmask 31744
        %v216 = vsel %vm215, %v211, -inf
        %217 = vmax.xlane.f32.xlu0 %v216
        %v218 = vpop.xlane.xlu0 %217
        %v219 = vsel %vm215, %v212, -inf
        %220 = vmax.xlane.f32.xlu0 %v219
        %v221 = vpop.xlane.xlu0 %220
        %v222 = vsel %vm215, %v213, -inf
        %223 = vmax.xlane.f32.xlu0 %v222
        %v224 = vpop.xlane.xlu0 %223
        %v225 = vsel %vm215, %v214, -inf
        %226 = vmax.xlane.f32.xlu0 %v225
        %v227 = vpop.xlane.xlu0 %226
        %v228 = vsub.f32 %v211, %v218
        %v229 = vsub.f32 %v212, %v221
        %v230 = vsub.f32 %v213, %v224
        %v231 = vsub.f32 %v214, %v227
        %v232 = vmul.f32 %v228, 1.442695
        %v233 = vpow.pop %v232
        %v234 = vmul.f32 %v229, 1.442695
        %v235 = vpow.pop %v234
        %v236 = vmul.f32 %v230, 1.442695
        %v237 = vpow.pop %v236
        %v238 = vmul.f32 %v231, 1.442695
        %v239 = vpow.pop %v238
        %v240 = vsel %vm215, %v233, 0.0
        %241 = vadd.xlane.f32.xlu0 %v240
        %v242 = vpop.xlane.xlu0 %241
        %v243 = vsel %vm215, %v235, 0.0
        %244 = vadd.xlane.f32.xlu0 %v243
        %v245 = vpop.xlane.xlu0 %244
        %v246 = vsel %vm215, %v237, 0.0
        %247 = vadd.xlane.f32.xlu0 %v246
        %v248 = vpop.xlane.xlu0 %247
        %v249 = vsel %vm215, %v239, 0.0
        %250 = vadd.xlane.f32.xlu0 %v249
        %v251 = vpop.xlane.xlu0 %250
        %v252 = vrcp.pop %v242
        %v253 = vrcp.pop %v245
        %v254 = vrcp.pop %v248
        %v255 = vrcp.pop %v251
        %v256 = vmul.f32 %v233, %v252
        %v257 = vmul.f32 %v235, %v253
        %v258 = vmul.f32 %v237, %v254
        %v259 = vmul.f32 %v239, %v255
        %v260 = vlaneseq
        %v261 = vand.u32 %v260, 127
        %262 = vset.pattern.permute.xlu0 0
        %263 = vperm.xlu0 %262, %v195
        %v264 = vpop.permute.xlu0 %263
        %265 = vset.pattern.permute.xlu0 0
        %266 = vperm.xlu0 %265, %v196
        %v267 = vpop.permute.xlu0 %266
        %268 = vset.pattern.permute.xlu0 0
        %269 = vperm.xlu0 %268, %v197
        %v270 = vpop.permute.xlu0 %269
        %271 = vset.pattern.permute.xlu0 0
        %272 = vperm.xlu0 %271, %v198
        %v273 = vpop.permute.xlu0 %272
        %vm274 = vcmp.eq.s32.totalorder %v264, %v261
        %vm275 = vcmp.eq.s32.totalorder %v267, %v261
        %vm276 = vcmp.eq.s32.totalorder %v270, %v261
        %vm277 = vcmp.eq.s32.totalorder %v273, %v261
        %v278 = vsel %vm274, 1, 0
        %v279 = vsel %vm275, 1, 0
        %v280 = vsel %vm276, 1, 0
        %v281 = vsel %vm277, 1, 0
        %v282 = vcvt.s32.f32 %v278
        %v283 = vcvt.s32.f32 %v279
        %v284 = vcvt.s32.f32 %v280
        %v285 = vcvt.s32.f32 %v281
        %287 = vset.pattern.permute.xlu0 0
        %288 = vperm.xlu0 %287, %v256
        %v289 = vpop.permute.xlu0 %288
        %292 = vset.pattern.permute.xlu0 0
        %293 = vperm.xlu0 %292, %v257
        %v294 = vpop.permute.xlu0 %293
        %297 = vset.pattern.permute.xlu0 0
        %298 = vperm.xlu0 %297, %v258
        %v299 = vpop.permute.xlu0 %298
        %302 = vset.pattern.permute.xlu0 0
        %303 = vperm.xlu0 %302, %v259
        %v304 = vpop.permute.xlu0 %303
        %v306 = vmul.f32 %v289, %v282
        %v307 = vmul.f32 %v294, %v283
        %v308 = vmul.f32 %v299, %v284
        %v309 = vmul.f32 %v304, %v285
        %v310 = vadd.f32 %v306, 0.0
        %v311 = vadd.f32 %v307, 0.0
        %v312 = vadd.f32 %v308, 0.0
        %v313 = vadd.f32 %v309, 0.0
        %314 = vset.pattern.permute.xlu0 1
        %315 = vperm.xlu0 %314, %v195
        %v316 = vpop.permute.xlu0 %315
        %317 = vset.pattern.permute.xlu0 1
        %318 = vperm.xlu0 %317, %v196
        %v319 = vpop.permute.xlu0 %318
        %320 = vset.pattern.permute.xlu0 1
        %321 = vperm.xlu0 %320, %v197
        %v322 = vpop.permute.xlu0 %321
        %323 = vset.pattern.permute.xlu0 1
        %324 = vperm.xlu0 %323, %v198
        %v325 = vpop.permute.xlu0 %324
        %vm326 = vcmp.eq.s32.totalorder %v316, %v261
        %vm327 = vcmp.eq.s32.totalorder %v319, %v261
        %vm328 = vcmp.eq.s32.totalorder %v322, %v261
        %vm329 = vcmp.eq.s32.totalorder %v325, %v261
        %v330 = vsel %vm326, 1, 0
        %v331 = vsel %vm327, 1, 0
        %v332 = vsel %vm328, 1, 0
        %v333 = vsel %vm329, 1, 0
        %v334 = vcvt.s32.f32 %v330
        %v335 = vcvt.s32.f32 %v331
        %v336 = vcvt.s32.f32 %v332
        %v337 = vcvt.s32.f32 %v333
        %338 = vset.pattern.permute.xlu0 1
        %339 = vperm.xlu0 %338, %v256
        %v340 = vpop.permute.xlu0 %339
        %342 = vset.pattern.permute.xlu0 1
        %343 = vperm.xlu0 %342, %v257
        %v344 = vpop.permute.xlu0 %343
        %346 = vset.pattern.permute.xlu0 1
        %347 = vperm.xlu0 %346, %v258
        %v348 = vpop.permute.xlu0 %347
        %350 = vset.pattern.permute.xlu0 1
        %351 = vperm.xlu0 %350, %v259
        %v352 = vpop.permute.xlu0 %351
        %v354 = vmul.f32 %v340, %v334
        %v355 = vmul.f32 %v344, %v335
        %v356 = vmul.f32 %v348, %v336
        %v357 = vmul.f32 %v352, %v337
        %v358 = vadd.f32 %v310, %v354
        %v359 = vadd.f32 %v311, %v355
        %v360 = vadd.f32 %v312, %v356
        %v361 = vadd.f32 %v313, %v357
        %362 = vset.pattern.permute.xlu0 2
        %363 = vperm.xlu0 %362, %v195
        %v364 = vpop.permute.xlu0 %363
        %365 = vset.pattern.permute.xlu0 2
        %366 = vperm.xlu0 %365, %v196
        %v367 = vpop.permute.xlu0 %366
        %368 = vset.pattern.permute.xlu0 2
        %369 = vperm.xlu0 %368, %v197
        %v370 = vpop.permute.xlu0 %369
        %371 = vset.pattern.permute.xlu0 2
        %372 = vperm.xlu0 %371, %v198
        %v373 = vpop.permute.xlu0 %372
        %vm374 = vcmp.eq.s32.totalorder %v364, %v261
        %vm375 = vcmp.eq.s32.totalorder %v367, %v261
        %vm376 = vcmp.eq.s32.totalorder %v370, %v261
        %vm377 = vcmp.eq.s32.totalorder %v373, %v261
        %v378 = vsel %vm374, 1, 0
        %v379 = vsel %vm375, 1, 0
        %v380 = vsel %vm376, 1, 0
        %v381 = vsel %vm377, 1, 0
        %v382 = vcvt.s32.f32 %v378
        %v383 = vcvt.s32.f32 %v379
        %v384 = vcvt.s32.f32 %v380
        %v385 = vcvt.s32.f32 %v381
        %386 = vset.pattern.permute.xlu0 2
        %387 = vperm.xlu0 %386, %v256
        %v388 = vpop.permute.xlu0 %387
        %390 = vset.pattern.permute.xlu0 2
        %391 = vperm.xlu0 %390, %v257
        %v392 = vpop.permute.xlu0 %391
        %394 = vset.pattern.permute.xlu0 2
        %395 = vperm.xlu0 %394, %v258
        %v396 = vpop.permute.xlu0 %395
        %398 = vset.pattern.permute.xlu0 2
        %399 = vperm.xlu0 %398, %v259
        %v400 = vpop.permute.xlu0 %399
        %v402 = vmul.f32 %v388, %v382
        %v403 = vmul.f32 %v392, %v383
        %v404 = vmul.f32 %v396, %v384
        %v405 = vmul.f32 %v400, %v385
        %v406 = vadd.f32 %v358, %v402
        %v407 = vadd.f32 %v359, %v403
        %v408 = vadd.f32 %v360, %v404
        %v409 = vadd.f32 %v361, %v405
        %410 = vset.pattern.permute.xlu0 3
        %411 = vperm.xlu0 %410, %v195
        %v412 = vpop.permute.xlu0 %411
        %413 = vset.pattern.permute.xlu0 3
        %414 = vperm.xlu0 %413, %v196
        %v415 = vpop.permute.xlu0 %414
        %416 = vset.pattern.permute.xlu0 3
        %417 = vperm.xlu0 %416, %v197
        %v418 = vpop.permute.xlu0 %417
        %419 = vset.pattern.permute.xlu0 3
        %420 = vperm.xlu0 %419, %v198
        %v421 = vpop.permute.xlu0 %420
        %vm422 = vcmp.eq.s32.totalorder %v412, %v261
        %vm423 = vcmp.eq.s32.totalorder %v415, %v261
        %vm424 = vcmp.eq.s32.totalorder %v418, %v261
        %vm425 = vcmp.eq.s32.totalorder %v421, %v261
        %v426 = vsel %vm422, 1, 0
        %v427 = vsel %vm423, 1, 0
        %v428 = vsel %vm424, 1, 0
        %v429 = vsel %vm425, 1, 0
        %v430 = vcvt.s32.f32 %v426
        %v431 = vcvt.s32.f32 %v427
        %v432 = vcvt.s32.f32 %v428
        %v433 = vcvt.s32.f32 %v429
        %434 = vset.pattern.permute.xlu0 3
        %435 = vperm.xlu0 %434, %v256
        %v436 = vpop.permute.xlu0 %435
        %438 = vset.pattern.permute.xlu0 3
        %439 = vperm.xlu0 %438, %v257
        %v440 = vpop.permute.xlu0 %439
        %442 = vset.pattern.permute.xlu0 3
        %443 = vperm.xlu0 %442, %v258
        %v444 = vpop.permute.xlu0 %443
        %446 = vset.pattern.permute.xlu0 3
        %447 = vperm.xlu0 %446, %v259
        %v448 = vpop.permute.xlu0 %447
        %v450 = vmul.f32 %v436, %v430
        %v451 = vmul.f32 %v440, %v431
        %v452 = vmul.f32 %v444, %v432
        %v453 = vmul.f32 %v448, %v433
        %v454 = vadd.f32 %v406, %v450
        %v455 = vadd.f32 %v407, %v451
        %v456 = vadd.f32 %v408, %v452
        %v457 = vadd.f32 %v409, %v453
        %v458 = vpack.c.bf16 %v455, %v454
        %v459 = vpack.c.bf16 %v457, %v456
        %v460 = vld [vmem:[%s2] sm:$0xf]
        %v461 = vld [vmem:[%s2 + $0x4] sm:$0xf]
        %v462 = vld [vmem:[%s2 + $0x8] sm:$0xf]
        %v463 = vld [vmem:[%s2 + $0xc] sm:$0xf]
        %v464 = vld [vmem:[%s2 + $0x10] sm:$0xf]
        %v465 = vld [vmem:[%s2 + $0x14] sm:$0xf]
        %v466 = vld [vmem:[%s2 + $0x18] sm:$0xf]
        %v467 = vld [vmem:[%s2 + $0x1c] sm:$0xf]
        %v476 = vunpack.c.l.b16 %v460
        %v477 = vunpack.c.l.b16 %v461
        %v478 = vunpack.c.l.b16 %v462
        %v479 = vunpack.c.l.b16 %v463
        %v480 = vunpack.c.l.b16 %v464
        %v481 = vunpack.c.l.b16 %v465
        %v482 = vunpack.c.l.b16 %v466
        %v483 = vunpack.c.l.b16 %v467
        %v484 = vpack.c.b16 %v477, %v476
        %v485 = vpack.c.b16 %v479, %v478
        %v486 = vpack.c.b16 %v481, %v480
        %v487 = vpack.c.b16 %v483, %v482
        %vm492 = vcmask 523264
        %v494 = vsel %vm492, %v458, 0
        %v497 = vsel %vm492, %v459, 0
        %499 = vmatprep.subr.bf16.mxu0 0
        %500 = vmatpush1.bf16.msra.mxu0 0
        %501 = vmatprep.subr.bf16.mxu0 0
        %502 = vmatpush1.bf16.msra.mxu0 0
        %503 = vmatprep.subr.bf16.mxu0 0
        %504 = vmatpush1.bf16.msra.mxu0 0
        %505 = vmatprep.subr.bf16.mxu0 0
        %506 = vmatpush1.bf16.msra.mxu0 0
        %507 = vmatprep.subr.bf16.mxu0 0
        %508 = vmatpush1.bf16.msra.mxu0 %v487
        %509 = vmatprep.subr.bf16.mxu0 0
        %510 = vmatpush1.bf16.msra.mxu0 %v486
        %511 = vmatprep.subr.bf16.mxu0 0
        %512 = vmatpush1.bf16.msra.mxu0 %v485
        %513 = vmatprep.subr.bf16.mxu0 0
        %514 = vmatpush1.bf16.msra.mxu0 %v484
        %515 = vmatprep.subr.bf16.mxu0 0
        %516 = vmatpush2.bf16.msra.mxu0 0
        %517 = vmatprep.subr.bf16.mxu0 0
        %518 = vmatpush2.bf16.msra.mxu0 0
        %519 = vmatprep.subr.bf16.mxu0 0
        %520 = vmatpush2.bf16.msra.mxu0 0
        %521 = vmatprep.subr.bf16.mxu0 0
        %522 = vmatpush2.bf16.msra.mxu0 0
        %523 = vmatprep.subr.bf16.mxu0 0
        %524 = vmatpush2.bf16.msra.mxu0 0
        %525 = vmatprep.subr.bf16.mxu0 0
        %526 = vmatpush2.bf16.msra.mxu0 0
        %527 = vmatprep.subr.bf16.mxu0 0
        %528 = vmatpush2.bf16.msra.mxu0 0
        %529 = vmatprep.subr.bf16.mxu0 0
        %530 = vmatpush2.bf16.msra.mxu0 0
        %531 = vmatprep.mubr.bf16.mxu0 0
        %532 = vmatmul.mubr.bf16.gmra.mxu0 %v494
        %v533 = vpop.f32.mrf.mxu0
        %v534 = vadd.f32 0.0, %v533
        %v535 = vpop.f32.mrf.mxu0
        %v536 = vpop.f32.mrf.mxu0
        %v537 = vadd.f32 0.0, %v536
        %v538 = vpop.f32.mrf.mxu0
        %539 = vmatprep.mubr.bf16.mxu0 0
        %540 = vmatmul.mubr.bf16.gmra.mxu0 %v497
        %v541 = vpop.f32.mrf.mxu0
        %v542 = vadd.f32 0.0, %v541
        %v543 = vpop.f32.mrf.mxu0
        %v544 = vpop.f32.mrf.mxu0
        %v545 = vadd.f32 0.0, %v544
        %v546 = vpop.f32.mrf.mxu0
        %547 = vdwg.mxu0
        %548 = vst [vmem:[%s180] sm:$0xff] %v534
        %549 = vst [vmem:[%s180 + $0x8] sm:$0xff] %v537
        %550 = vst [vmem:[%s180 + $0x10] sm:$0xff] %v542
        %551 = vst [vmem:[%s180 + $0x18] sm:$0xff] %v545
        %s552 = sand.u32 %s98, 1
        %s553 = scalar_lea.sflag [#allocation3], %s552
        %s554 = sand.u32 %s98, 1
        %s555 = smul.addr %s554, 32
        %s556 = scalar_lea.vmem [#allocation2], %s555
        // Predicated region
        $region33: #{tpu_custom_call.1} parent=31 // pred_check
          %p557 = pneg %p108
        $region34: #{tpu_custom_call.1} parent=31 // pred_check_branch
          %559 = sbr.rel (%p557) target = $region36
        $region35: #{tpu_custom_call.1} parent=31 // pred_region
          %s560 = smul.u32 4, %s17
          %s562 = ssub.s32 512, 512
          %563 = vsyncadd %s553, %s562
          %s564 = smul.addr %s560, 128
          %s565 = scalar_lea.hbm %s3, %s564
          %s566 = sshll.u32 %s556, 4
          %s567 = int_to_ptr.vmem [resolvable:$true] %s566
          %572 = dma.vmem_to_hbm [thread:$0]  %s567, 512, %s565, %s553, 128, 128, 8
        $region36: #{tpu_custom_call.1} parent=31 // pred_fallthru
          _
      $region32: #{tpu_custom_call.1} parent=5 // pred_fallthru
        _
      %p573 = scmp.le.s32.totalorder 2, %s12
      // Predicated region
      $region37: #{tpu_custom_call.1} parent=5 // pred_check
        %p574 = pneg %p573
      $region38: #{tpu_custom_call.1} parent=5 // pred_check_branch
        %576 = sbr.rel (%p574) target = $region40
      $region39: #{tpu_custom_call.1} parent=5 // pred_region
        %s577 = ssub.s32 %s12, 2
        // Predicated region
        $region41: #{tpu_custom_call.1} parent=39 // pred_check
          %p578 = pneg %p114
        $region42: #{tpu_custom_call.1} parent=39 // pred_check_branch
          %580 = sbr.rel (%p578) target = $region44
        $region43: #{tpu_custom_call.1} parent=39 // pred_region
          %s581 = sand.u32 %s99, 1
          %s582 = scalar_lea.sflag [#allocation3], %s581
          %s583 = sand.u32 %s99, 1
          %s584 = smul.addr %s583, 32
          %s585 = scalar_lea.vmem [#allocation2], %s584
          %586 = dma.done %s582, 512
        $region44: #{tpu_custom_call.1} parent=39 // pred_fallthru
          _
      $region40: #{tpu_custom_call.1} parent=5 // pred_fallthru
        _
    $region6: #{tpu_custom_call.1} parent=1 // loop_footer
      %s16 = sadd.s32 1, %s12
    $region7: #{tpu_custom_call.1} parent=1 // loop_footer_branch
      %11 = sbr.rel target = $region3
    $region8: #{tpu_custom_call.1} parent=1 // loop_exit
      _
    %587 = vsyncpa [#allocation3], 1
    %s588 = scalar_lea.sflag [#allocation3], 1
    %589 = vsyncpa %s588, 1

// kernel: tpu_custom_call.1
$region0: #{tpu_custom_call.1}
  #allocation0 [shape = 'u32[]', space=smem, size = 0x4, offset = 0x4, fixed_abs, tag = 'smem constant byte address 0x4 - core index']
  #allocation1 [shape = 'u32[144,128]{1,0:T(1,128)}', space=vmem, size = 0x12000, scoped, tag = 'internal scratch']
  %s0 = inlined_call_operand.vmem [shape: s32[256,4], index: 0, kind: input, shape index: {}]
  %s1 = inlined_call_operand.vmem [shape: f32[256,4], index: 1, kind: input, shape index: {}]
  %s2 = inlined_call_operand.vmem [shape: bf16[64,128], index: 2, kind: input, shape index: {}]
  %s3 = inlined_call_operand.hbm [shape: f32[256,128], index: 3, kind: output, shape index: {}]
  %s4 = sld [smem:[#allocation0]]
  $region45: #{tpu_custom_call.1} parent=0
    _
  %s6 = ssub.s32 1, %s4
  %s7 = scalar_select 0, %s6, %s4
  $region1: #{tpu_custom_call.1} parent=0
    #allocation2 [shape = 'u8[32768]{0}', space=vmem, size = 0x8000, scoped, tag = 'output window, operand 0']
    #allocation3 [shape = 's32[2]{0}', space=sflag, size = 0x8, scoped, tag = 'scoped memory for tpu_custom_call.1']
    %8 = vsyncpa [#allocation3], 0
    %s9 = scalar_lea.sflag [#allocation3], 1
    %10 = vsyncpa %s9, 0
    loop: start=0, step=1, limit=10
    $region2: #{tpu_custom_call.1} parent=1 // loop_pre_header
      _
    $region3: #{tpu_custom_call.1} parent=1 // loop_header
      %s12 = sphi 0, %s16
      %p13 = scmp.ge.s32.totalorder %s12, 10
      %s22 = sphi 0, %s24
      %s25 = sphi 0, %s22
      %s26 = sphi 0, %s25
      %s42 = sphi 0, %s26
      %s48 = sphi 0, %s50
      %s51 = sphi 0, %s48
      %s52 = sphi 0, %s51
      %s68 = sphi 0, %s52
      %s72 = sphi 0, %s72
      %s74 = sphi 0, %s72
      %s75 = sphi 0, %s74
      %s89 = sphi 0, %s75
      %s95 = sphi 0, %s97
      %s98 = sphi 0, %s95
      %s99 = sphi 0, %s98
      %s115 = sphi 0, %s99
    $region4: #{tpu_custom_call.1} parent=1 // loop_header_branch
      %15 = sbr.rel (%p13) target = $region8
    $region5: #{tpu_custom_call.1} parent=1 // loop_body
      %s17 = ssub.s32 %s12, 1
      %s18 = ssub.s32 %s12, 2
      %s19 = sadd.s32 %s12, 1
      %s20 = ssub.s32 %s12, %s19
      %p21 = scmp.eq.s32.totalorder %s20, 0
      %s23 = sadd.s32 %s22, 1
      %s24 = scalar_select %p21, %s22, %s23
      %p27 = pneg %p21
      %p28 = scmp.eq.s32.totalorder %s12, 7
      %p29 = por %p27, %p28
      %p30 = scmp.ne.s32.totalorder %s22, %s25
      %p31 = scmp.eq.s32.totalorder %s12, 0
      %p32 = por %p30, %p31
      %p33 = scmp.ne.s32.totalorder %s22, %s25
      %p34 = scmp.eq.s32.totalorder %s17, 7
      %p35 = por %p33, %p34
      %p36 = scmp.ne.s32.totalorder %s25, %s26
      %p37 = scmp.eq.s32.totalorder %s17, 0
      %p38 = por %p36, %p37
      %p39 = scmp.ne.s32.totalorder %s25, %s26
      %p40 = scmp.eq.s32.totalorder %s18, 7
      %p41 = por %p39, %p40
      %p43 = scmp.ne.s32.totalorder %s26, %s42
      %p44 = scmp.eq.s32.totalorder %s18, 0
      %p45 = por %p43, %p44
      %s46 = ssub.s32 %s12, %s19
      %p47 = scmp.eq.s32.totalorder %s46, 0
      %s49 = sadd.s32 %s48, 1
      %s50 = scalar_select %p47, %s48, %s49
      %p53 = pneg %p47
      %p54 = scmp.eq.s32.totalorder %s12, 7
      %p55 = por %p53, %p54
      %p56 = scmp.ne.s32.totalorder %s48, %s51
      %p57 = scmp.eq.s32.totalorder %s12, 0
      %p58 = por %p56, %p57
      %p59 = scmp.ne.s32.totalorder %s48, %s51
      %p60 = scmp.eq.s32.totalorder %s17, 7
      %p61 = por %p59, %p60
      %p62 = scmp.ne.s32.totalorder %s51, %s52
      %p63 = scmp.eq.s32.totalorder %s17, 0
      %p64 = por %p62, %p63
      %p65 = scmp.ne.s32.totalorder %s51, %s52
      %p66 = scmp.eq.s32.totalorder %s18, 7
      %p67 = por %p65, %p66
      %p69 = scmp.ne.s32.totalorder %s52, %s68
      %p70 = scmp.eq.s32.totalorder %s18, 0
      %p71 = por %p69, %p70
      %s73 = sadd.s32 %s72, 1
      %p76 = scmp.eq.s32.totalorder %s12, 7
      %p77 = scmp.ne.s32.totalorder %s72, %s74
      %p78 = scmp.eq.s32.totalorder %s12, 0
      %p79 = por %p77, %p78
      %p80 = scmp.ne.s32.totalorder %s72, %s74
      %p81 = scmp.eq.s32.totalorder %s17, 7
      %p82 = por %p80, %p81
      %p83 = scmp.ne.s32.totalorder %s74, %s75
      %p84 = scmp.eq.s32.totalorder %s17, 0
      %p85 = por %p83, %p84
      %p86 = scmp.ne.s32.totalorder %s74, %s75
      %p87 = scmp.eq.s32.totalorder %s18, 7
      %p88 = por %p86, %p87
      %p90 = scmp.ne.s32.totalorder %s75, %s89
      %p91 = scmp.eq.s32.totalorder %s18, 0
      %p92 = por %p90, %p91
      %s93 = ssub.s32 %s12, %s19
      %p94 = scmp.eq.s32.totalorder %s93, 0
      %s96 = sadd.s32 %s95, 1
      %s97 = scalar_select %p94, %s95, %s96
      %p100 = pneg %p94
      %p101 = scmp.eq.s32.totalorder %s12, 7
      %p102 = por %p100, %p101
      %p103 = scmp.ne.s32.totalorder %s95, %s98
      %p104 = scmp.eq.s32.totalorder %s12, 0
      %p105 = por %p103, %p104
      %p106 = scmp.ne.s32.totalorder %s95, %s98
      %p107 = scmp.eq.s32.totalorder %s17, 7
      %p108 = por %p106, %p107
      %p109 = scmp.ne.s32.totalorder %s98, %s99
      %p110 = scmp.eq.s32.totalorder %s17, 0
      %p111 = por %p109, %p110
      %p112 = scmp.ne.s32.totalorder %s98, %s99
      %p113 = scmp.eq.s32.totalorder %s18, 7
      %p114 = por %p112, %p113
      %p116 = scmp.ne.s32.totalorder %s99, %s115
      %p117 = scmp.eq.s32.totalorder %s18, 0
      %p118 = por %p116, %p117
      %p119 = scmp.le.s32.totalorder 1, %s12
      %p120 = scmp.lt.s32.totalorder %s12, 9
      %p121 = pnand %p119, %p120
      %p122 = pneg %p121
      // Predicated region
      $region9: #{tpu_custom_call.1} parent=5 // pred_check
        _
      $region10: #{tpu_custom_call.1} parent=5 // pred_check_branch
        %124 = sbr.rel (%p121) target = $region12
      $region11: #{tpu_custom_call.1} parent=5 // pred_region
        %s125 = ssub.s32 %s12, 1
        // Predicated region
        $region13: #{tpu_custom_call.1} parent=11 // pred_check
          %p126 = pneg %p85
        $region14: #{tpu_custom_call.1} parent=11 // pred_check_branch
          %128 = sbr.rel (%p126) target = $region16
        $region15: #{tpu_custom_call.1} parent=11 // pred_region
          _
        $region16: #{tpu_custom_call.1} parent=11 // pred_fallthru
          _
      $region12: #{tpu_custom_call.1} parent=5 // pred_fallthru
        _
      %p129 = scmp.lt.s32.totalorder %s12, 8
      // Predicated region
      $region17: #{tpu_custom_call.1} parent=5 // pred_check
        %p130 = pneg %p129
      $region18: #{tpu_custom_call.1} parent=5 // pred_check_branch
        %132 = sbr.rel (%p130) target = $region20
      $region19: #{tpu_custom_call.1} parent=5 // pred_region
        // Predicated region
        $region21: #{tpu_custom_call.1} parent=19 // pred_check
          %p133 = pneg %p32
        $region22: #{tpu_custom_call.1} parent=19 // pred_check_branch
          %135 = sbr.rel (%p133) target = $region24
        $region23: #{tpu_custom_call.1} parent=19 // pred_region
          %s136 = smul.u32 4, %s12
          %p137 = scmp.lt.s32.totalorder %s136, 31
          %s138 = scalar_select %p137, %s136, 31
          %s139 = smul.addr %s138, 8
          %s140 = scalar_lea.vmem %s0, %s139
          %s141 = smul.u32 4, %s12
        $region24: #{tpu_custom_call.1} parent=19 // pred_fallthru
          _
        // Predicated region
        $region25: #{tpu_custom_call.1} parent=19 // pred_check
          %p142 = pneg %p58
        $region26: #{tpu_custom_call.1} parent=19 // pred_check_branch
          %144 = sbr.rel (%p142) target = $region28
        $region27: #{tpu_custom_call.1} parent=19 // pred_region
          %s145 = smul.u32 4, %s12
          %p146 = scmp.lt.s32.totalorder %s145, 31
          %s147 = scalar_select %p146, %s145, 31
          %s148 = smul.addr %s147, 8
          %s149 = scalar_lea.vmem %s1, %s148
          %s150 = smul.u32 4, %s12
        $region28: #{tpu_custom_call.1} parent=19 // pred_fallthru
          _
      $region20: #{tpu_custom_call.1} parent=5 // pred_fallthru
        _
      %p151 = scmp.le.s32.totalorder 1, %s12
      %p152 = scmp.lt.s32.totalorder %s12, 9
      %p153 = pnand %p151, %p152
      %p154 = pneg %p153
      // Predicated region
      $region29: #{tpu_custom_call.1} parent=5 // pred_check
        _
      $region30: #{tpu_custom_call.1} parent=5 // pred_check_branch
        %156 = sbr.rel (%p153) target = $region32
      $region31: #{tpu_custom_call.1} parent=5 // pred_region
        %s157 = ssub.s32 %s12, 1
        %s158 = smul.u32 4, %s17
        %p159 = scmp.lt.s32.totalorder %s158, 31
        %s160 = scalar_select %p159, %s158, 31
        %s161 = smul.addr %s160, 8
        %s162 = scalar_lea.vmem %s0, %s161
        %p163 = pneg %p38
        %p164 = pneg %p35
        %s165 = smul.u32 4, %s17
        %p166 = scmp.lt.s32.totalorder %s165, 31
        %s167 = scalar_select %p166, %s165, 31
        %s168 = smul.addr %s167, 8
        %s169 = scalar_lea.vmem %s1, %s168
        %p170 = pneg %p64
        %p171 = pneg %p61
        %p172 = pneg %p85
        %p173 = pneg %p82
        %p174 = pneg %p111
        %p175 = pneg %p108
        %s176 = sand.u32 %s98, 1
        %s177 = scalar_lea.sflag [#allocation3], %s176
        %s178 = sand.u32 %s98, 1
        %s179 = smul.addr %s178, 32
        %s180 = scalar_lea.vmem [#allocation2], %s179
        %s181 = smul.u32 4, %s17
        %p182 = scmp.lt.s32.totalorder %s181, 31
        %s183 = scalar_select %p182, %s181, 31
        %s184 = smul.addr %s183, 8
        %s185 = scalar_lea.vmem %s0, %s184
        %s186 = smul.u32 4, %s17
        %s187 = smul.u32 4, %s17
        %p188 = scmp.lt.s32.totalorder %s187, 31
        %s189 = scalar_select %p188, %s187, 31
        %s190 = smul.addr %s189, 8
        %s191 = scalar_lea.vmem %s1, %s190
        %s192 = smul.u32 4, %s17
        %s193 = smul.u32 4, %s17
        %v195 = vld [vmem:[%s185] sm:$0xff]
        %v196 = vld [vmem:[%s185 + $0x8] sm:$0xff]
        %v197 = vld [vmem:[%s185 + $0x10] sm:$0xff]
        %v198 = vld [vmem:[%s185 + $0x18] sm:$0xff]
        %v199 = vld [vmem:[%s191] sm:$0xff]
        %v200 = vld [vmem:[%s191 + $0x8] sm:$0xff]
        %v201 = vld [vmem:[%s191 + $0x10] sm:$0xff]
        %v202 = vld [vmem:[%s191 + $0x18] sm:$0xff]
        %vm203 = vcmp.ge.f32.partialorder %v199, 0.0
        %vm204 = vcmp.ge.f32.partialorder %v200, 0.0
        %vm205 = vcmp.ge.f32.partialorder %v201, 0.0
        %vm206 = vcmp.ge.f32.partialorder %v202, 0.0
        %v207 = vmul.f32 %v199, 0.01
        %v208 = vmul.f32 %v200, 0.01
        %v209 = vmul.f32 %v201, 0.01
        %v210 = vmul.f32 %v202, 0.01
        %v211 = vsel %vm203, %v199, %v207
        %v212 = vsel %vm204, %v200, %v208
        %v213 = vsel %vm205, %v201, %v209
        %v214 = vsel %vm206, %v202, %v210
        %vm215 = vcmask 31744
        %v216 = vsel %vm215, %v211, -inf
        %217 = vmax.xlane.f32.xlu0 %v216
        %v218 = vpop.xlane.xlu0 %217
        %v219 = vsel %vm215, %v212, -inf
        %220 = vmax.xlane.f32.xlu0 %v219
        %v221 = vpop.xlane.xlu0 %220
        %v222 = vsel %vm215, %v213, -inf
        %223 = vmax.xlane.f32.xlu0 %v222
        %v224 = vpop.xlane.xlu0 %223
        %v225 = vsel %vm215, %v214, -inf
        %226 = vmax.xlane.f32.xlu0 %v225
        %v227 = vpop.xlane.xlu0 %226
        %v228 = vsub.f32 %v211, %v218
        %v229 = vsub.f32 %v212, %v221
        %v230 = vsub.f32 %v213, %v224
        %v231 = vsub.f32 %v214, %v227
        %v232 = vmul.f32 %v228, 1.442695
        %v233 = vpow.pop %v232
        %v234 = vmul.f32 %v229, 1.442695
        %v235 = vpow.pop %v234
        %v236 = vmul.f32 %v230, 1.442695
        %v237 = vpow.pop %v236
        %v238 = vmul.f32 %v231, 1.442695
        %v239 = vpow.pop %v238
        %v240 = vsel %vm215, %v233, 0.0
        %241 = vadd.xlane.f32.xlu0 %v240
        %v242 = vpop.xlane.xlu0 %241
        %v243 = vsel %vm215, %v235, 0.0
        %244 = vadd.xlane.f32.xlu0 %v243
        %v245 = vpop.xlane.xlu0 %244
        %v246 = vsel %vm215, %v237, 0.0
        %247 = vadd.xlane.f32.xlu0 %v246
        %v248 = vpop.xlane.xlu0 %247
        %v249 = vsel %vm215, %v239, 0.0
        %250 = vadd.xlane.f32.xlu0 %v249
        %v251 = vpop.xlane.xlu0 %250
        %v252 = vrcp.pop %v242
        %v253 = vrcp.pop %v245
        %v254 = vrcp.pop %v248
        %v255 = vrcp.pop %v251
        %v256 = vmul.f32 %v233, %v252
        %v257 = vmul.f32 %v235, %v253
        %v258 = vmul.f32 %v237, %v254
        %v259 = vmul.f32 %v239, %v255
        %v260 = vlaneseq
        %v261 = vand.u32 %v260, 127
        %262 = vset.pattern.permute.xlu0 0
        %263 = vperm.xlu0 %262, %v195
        %v264 = vpop.permute.xlu0 %263
        %265 = vset.pattern.permute.xlu0 0
        %266 = vperm.xlu0 %265, %v196
        %v267 = vpop.permute.xlu0 %266
        %268 = vset.pattern.permute.xlu0 0
        %269 = vperm.xlu0 %268, %v197
        %v270 = vpop.permute.xlu0 %269
        %271 = vset.pattern.permute.xlu0 0
        %272 = vperm.xlu0 %271, %v198
        %v273 = vpop.permute.xlu0 %272
        %vm274 = vcmp.eq.s32.totalorder %v264, %v261
        %vm275 = vcmp.eq.s32.totalorder %v267, %v261
        %vm276 = vcmp.eq.s32.totalorder %v270, %v261
        %vm277 = vcmp.eq.s32.totalorder %v273, %v261
        %v278 = vsel %vm274, 1, 0
        %v279 = vsel %vm275, 1, 0
        %v280 = vsel %vm276, 1, 0
        %v281 = vsel %vm277, 1, 0
        %v282 = vcvt.s32.f32 %v278
        %v283 = vcvt.s32.f32 %v279
        %v284 = vcvt.s32.f32 %v280
        %v285 = vcvt.s32.f32 %v281
        %287 = vset.pattern.permute.xlu0 0
        %288 = vperm.xlu0 %287, %v256
        %v289 = vpop.permute.xlu0 %288
        %292 = vset.pattern.permute.xlu0 0
        %293 = vperm.xlu0 %292, %v257
        %v294 = vpop.permute.xlu0 %293
        %297 = vset.pattern.permute.xlu0 0
        %298 = vperm.xlu0 %297, %v258
        %v299 = vpop.permute.xlu0 %298
        %302 = vset.pattern.permute.xlu0 0
        %303 = vperm.xlu0 %302, %v259
        %v304 = vpop.permute.xlu0 %303
        %v306 = vmul.f32 %v289, %v282
        %v307 = vmul.f32 %v294, %v283
        %v308 = vmul.f32 %v299, %v284
        %v309 = vmul.f32 %v304, %v285
        %v310 = vadd.f32 %v306, 0.0
        %v311 = vadd.f32 %v307, 0.0
        %v312 = vadd.f32 %v308, 0.0
        %v313 = vadd.f32 %v309, 0.0
        %314 = vset.pattern.permute.xlu0 1
        %315 = vperm.xlu0 %314, %v195
        %v316 = vpop.permute.xlu0 %315
        %317 = vset.pattern.permute.xlu0 1
        %318 = vperm.xlu0 %317, %v196
        %v319 = vpop.permute.xlu0 %318
        %320 = vset.pattern.permute.xlu0 1
        %321 = vperm.xlu0 %320, %v197
        %v322 = vpop.permute.xlu0 %321
        %323 = vset.pattern.permute.xlu0 1
        %324 = vperm.xlu0 %323, %v198
        %v325 = vpop.permute.xlu0 %324
        %vm326 = vcmp.eq.s32.totalorder %v316, %v261
        %vm327 = vcmp.eq.s32.totalorder %v319, %v261
        %vm328 = vcmp.eq.s32.totalorder %v322, %v261
        %vm329 = vcmp.eq.s32.totalorder %v325, %v261
        %v330 = vsel %vm326, 1, 0
        %v331 = vsel %vm327, 1, 0
        %v332 = vsel %vm328, 1, 0
        %v333 = vsel %vm329, 1, 0
        %v334 = vcvt.s32.f32 %v330
        %v335 = vcvt.s32.f32 %v331
        %v336 = vcvt.s32.f32 %v332
        %v337 = vcvt.s32.f32 %v333
        %338 = vset.pattern.permute.xlu0 1
        %339 = vperm.xlu0 %338, %v256
        %v340 = vpop.permute.xlu0 %339
        %342 = vset.pattern.permute.xlu0 1
        %343 = vperm.xlu0 %342, %v257
        %v344 = vpop.permute.xlu0 %343
        %346 = vset.pattern.permute.xlu0 1
        %347 = vperm.xlu0 %346, %v258
        %v348 = vpop.permute.xlu0 %347
        %350 = vset.pattern.permute.xlu0 1
        %351 = vperm.xlu0 %350, %v259
        %v352 = vpop.permute.xlu0 %351
        %v354 = vmul.f32 %v340, %v334
        %v355 = vmul.f32 %v344, %v335
        %v356 = vmul.f32 %v348, %v336
        %v357 = vmul.f32 %v352, %v337
        %v358 = vadd.f32 %v310, %v354
        %v359 = vadd.f32 %v311, %v355
        %v360 = vadd.f32 %v312, %v356
        %v361 = vadd.f32 %v313, %v357
        %362 = vset.pattern.permute.xlu0 2
        %363 = vperm.xlu0 %362, %v195
        %v364 = vpop.permute.xlu0 %363
        %365 = vset.pattern.permute.xlu0 2
        %366 = vperm.xlu0 %365, %v196
        %v367 = vpop.permute.xlu0 %366
        %368 = vset.pattern.permute.xlu0 2
        %369 = vperm.xlu0 %368, %v197
        %v370 = vpop.permute.xlu0 %369
        %371 = vset.pattern.permute.xlu0 2
        %372 = vperm.xlu0 %371, %v198
        %v373 = vpop.permute.xlu0 %372
        %vm374 = vcmp.eq.s32.totalorder %v364, %v261
        %vm375 = vcmp.eq.s32.totalorder %v367, %v261
        %vm376 = vcmp.eq.s32.totalorder %v370, %v261
        %vm377 = vcmp.eq.s32.totalorder %v373, %v261
        %v378 = vsel %vm374, 1, 0
        %v379 = vsel %vm375, 1, 0
        %v380 = vsel %vm376, 1, 0
        %v381 = vsel %vm377, 1, 0
        %v382 = vcvt.s32.f32 %v378
        %v383 = vcvt.s32.f32 %v379
        %v384 = vcvt.s32.f32 %v380
        %v385 = vcvt.s32.f32 %v381
        %386 = vset.pattern.permute.xlu0 2
        %387 = vperm.xlu0 %386, %v256
        %v388 = vpop.permute.xlu0 %387
        %390 = vset.pattern.permute.xlu0 2
        %391 = vperm.xlu0 %390, %v257
        %v392 = vpop.permute.xlu0 %391
        %394 = vset.pattern.permute.xlu0 2
        %395 = vperm.xlu0 %394, %v258
        %v396 = vpop.permute.xlu0 %395
        %398 = vset.pattern.permute.xlu0 2
        %399 = vperm.xlu0 %398, %v259
        %v400 = vpop.permute.xlu0 %399
        %v402 = vmul.f32 %v388, %v382
        %v403 = vmul.f32 %v392, %v383
        %v404 = vmul.f32 %v396, %v384
        %v405 = vmul.f32 %v400, %v385
        %v406 = vadd.f32 %v358, %v402
        %v407 = vadd.f32 %v359, %v403
        %v408 = vadd.f32 %v360, %v404
        %v409 = vadd.f32 %v361, %v405
        %410 = vset.pattern.permute.xlu0 3
        %411 = vperm.xlu0 %410, %v195
        %v412 = vpop.permute.xlu0 %411
        %413 = vset.pattern.permute.xlu0 3
        %414 = vperm.xlu0 %413, %v196
        %v415 = vpop.permute.xlu0 %414
        %416 = vset.pattern.permute.xlu0 3
        %417 = vperm.xlu0 %416, %v197
        %v418 = vpop.permute.xlu0 %417
        %419 = vset.pattern.permute.xlu0 3
        %420 = vperm.xlu0 %419, %v198
        %v421 = vpop.permute.xlu0 %420
        %vm422 = vcmp.eq.s32.totalorder %v412, %v261
        %vm423 = vcmp.eq.s32.totalorder %v415, %v261
        %vm424 = vcmp.eq.s32.totalorder %v418, %v261
        %vm425 = vcmp.eq.s32.totalorder %v421, %v261
        %v426 = vsel %vm422, 1, 0
        %v427 = vsel %vm423, 1, 0
        %v428 = vsel %vm424, 1, 0
        %v429 = vsel %vm425, 1, 0
        %v430 = vcvt.s32.f32 %v426
        %v431 = vcvt.s32.f32 %v427
        %v432 = vcvt.s32.f32 %v428
        %v433 = vcvt.s32.f32 %v429
        %434 = vset.pattern.permute.xlu0 3
        %435 = vperm.xlu0 %434, %v256
        %v436 = vpop.permute.xlu0 %435
        %438 = vset.pattern.permute.xlu0 3
        %439 = vperm.xlu0 %438, %v257
        %v440 = vpop.permute.xlu0 %439
        %442 = vset.pattern.permute.xlu0 3
        %443 = vperm.xlu0 %442, %v258
        %v444 = vpop.permute.xlu0 %443
        %446 = vset.pattern.permute.xlu0 3
        %447 = vperm.xlu0 %446, %v259
        %v448 = vpop.permute.xlu0 %447
        %v450 = vmul.f32 %v436, %v430
        %v451 = vmul.f32 %v440, %v431
        %v452 = vmul.f32 %v444, %v432
        %v453 = vmul.f32 %v448, %v433
        %v454 = vadd.f32 %v406, %v450
        %v455 = vadd.f32 %v407, %v451
        %v456 = vadd.f32 %v408, %v452
        %v457 = vadd.f32 %v409, %v453
        %v458 = vpack.c.bf16 %v455, %v454
        %v459 = vpack.c.bf16 %v457, %v456
        %v460 = vld [vmem:[%s2] sm:$0xf]
        %v461 = vld [vmem:[%s2 + $0x4] sm:$0xf]
        %v462 = vld [vmem:[%s2 + $0x8] sm:$0xf]
        %v463 = vld [vmem:[%s2 + $0xc] sm:$0xf]
        %v464 = vld [vmem:[%s2 + $0x10] sm:$0xf]
        %v465 = vld [vmem:[%s2 + $0x14] sm:$0xf]
        %v466 = vld [vmem:[%s2 + $0x18] sm:$0xf]
        %v467 = vld [vmem:[%s2 + $0x1c] sm:$0xf]
        %v476 = vunpack.c.l.b16 %v460
        %v477 = vunpack.c.l.b16 %v461
        %v478 = vunpack.c.l.b16 %v462
        %v479 = vunpack.c.l.b16 %v463
        %v480 = vunpack.c.l.b16 %v464
        %v481 = vunpack.c.l.b16 %v465
        %v482 = vunpack.c.l.b16 %v466
        %v483 = vunpack.c.l.b16 %v467
        %v484 = vpack.c.b16 %v477, %v476
        %v485 = vpack.c.b16 %v479, %v478
        %v486 = vpack.c.b16 %v481, %v480
        %v487 = vpack.c.b16 %v483, %v482
        %vm492 = vcmask 523264
        %v494 = vsel %vm492, %v458, 0
        %v497 = vsel %vm492, %v459, 0
        %499 = vmatprep.subr.bf16.mxu0 0
        %500 = vmatpush1.bf16.msra.mxu0 0
        %501 = vmatprep.subr.bf16.mxu0 0
        %502 = vmatpush1.bf16.msra.mxu0 0
        %503 = vmatprep.subr.bf16.mxu0 0
        %504 = vmatpush1.bf16.msra.mxu0 0
        %505 = vmatprep.subr.bf16.mxu0 0
        %506 = vmatpush1.bf16.msra.mxu0 0
        %507 = vmatprep.subr.bf16.mxu0 0
        %508 = vmatpush1.bf16.msra.mxu0 %v487
        %509 = vmatprep.subr.bf16.mxu0 0
        %510 = vmatpush1.bf16.msra.mxu0 %v486
        %511 = vmatprep.subr.bf16.mxu0 0
        %512 = vmatpush1.bf16.msra.mxu0 %v485
        %513 = vmatprep.subr.bf16.mxu0 0
        %514 = vmatpush1.bf16.msra.mxu0 %v484
        %515 = vmatprep.subr.bf16.mxu0 0
        %516 = vmatpush2.bf16.msra.mxu0 0
        %517 = vmatprep.subr.bf16.mxu0 0
        %518 = vmatpush2.bf16.msra.mxu0 0
        %519 = vmatprep.subr.bf16.mxu0 0
        %520 = vmatpush2.bf16.msra.mxu0 0
        %521 = vmatprep.subr.bf16.mxu0 0
        %522 = vmatpush2.bf16.msra.mxu0 0
        %523 = vmatprep.subr.bf16.mxu0 0
        %524 = vmatpush2.bf16.msra.mxu0 0
        %525 = vmatprep.subr.bf16.mxu0 0
        %526 = vmatpush2.bf16.msra.mxu0 0
        %527 = vmatprep.subr.bf16.mxu0 0
        %528 = vmatpush2.bf16.msra.mxu0 0
        %529 = vmatprep.subr.bf16.mxu0 0
        %530 = vmatpush2.bf16.msra.mxu0 0
        %531 = vmatprep.mubr.bf16.mxu0 0
        %532 = vmatmul.mubr.bf16.gmra.mxu0 %v494
        %v533 = vpop.f32.mrf.mxu0
        %v534 = vadd.f32 0.0, %v533
        %v535 = vpop.f32.mrf.mxu0
        %v536 = vpop.f32.mrf.mxu0
        %v537 = vadd.f32 0.0, %v536
        %v538 = vpop.f32.mrf.mxu0
        %539 = vmatprep.mubr.bf16.mxu0 0
        %540 = vmatmul.mubr.bf16.gmra.mxu0 %v497
        %v541 = vpop.f32.mrf.mxu0
        %v542 = vadd.f32 0.0, %v541
        %v543 = vpop.f32.mrf.mxu0
        %v544 = vpop.f32.mrf.mxu0
        %v545 = vadd.f32 0.0, %v544
        %v546 = vpop.f32.mrf.mxu0
        %547 = vdwg.mxu0
        %548 = vst [vmem:[%s180] sm:$0xff] %v534
        %549 = vst [vmem:[%s180 + $0x8] sm:$0xff] %v537
        %550 = vst [vmem:[%s180 + $0x10] sm:$0xff] %v542
        %551 = vst [vmem:[%s180 + $0x18] sm:$0xff] %v545
        %s552 = sand.u32 %s98, 1
        %s553 = scalar_lea.sflag [#allocation3], %s552
        %s554 = sand.u32 %s98, 1
        %s555 = smul.addr %s554, 32
        %s556 = scalar_lea.vmem [#allocation2], %s555
        // Predicated region
        $region33: #{tpu_custom_call.1} parent=31 // pred_check
          %p557 = pneg %p108
        $region34: #{tpu_custom_call.1} parent=31 // pred_check_branch
          %559 = sbr.rel (%p557) target = $region36
        $region35: #{tpu_custom_call.1} parent=31 // pred_region
          %s560 = smul.u32 4, %s17
          %s562 = ssub.s32 512, 512
          %563 = vsyncadd %s553, %s562
          %s564 = smul.addr %s560, 128
          %s565 = scalar_lea.hbm %s3, %s564
          %s566 = sshll.u32 %s556, 4
          %s567 = int_to_ptr.vmem [resolvable:$true] %s566
          %572 = dma.vmem_to_hbm [thread:$0]  %s567, 512, %s565, %s553, 128, 128, 8
        $region36: #{tpu_custom_call.1} parent=31 // pred_fallthru
          _
      $region32: #{tpu_custom_call.1} parent=5 // pred_fallthru
        _
      %p573 = scmp.le.s32.totalorder 2, %s12
      // Predicated region
      $region37: #{tpu_custom_call.1} parent=5 // pred_check
        %p574 = pneg %p573
      $region38: #{tpu_custom_call.1} parent=5 // pred_check_branch
        %576 = sbr.rel (%p574) target = $region40
      $region39: #{tpu_custom_call.1} parent=5 // pred_region
        %s577 = ssub.s32 %s12, 2
        // Predicated region
        $region41: #{tpu_custom_call.1} parent=39 // pred_check
          %p578 = pneg %p114
        $region42: #{tpu_custom_call.1} parent=39 // pred_check_branch
          %580 = sbr.rel (%p578) target = $region44
        $region43: #{tpu_custom_call.1} parent=39 // pred_region
          %s581 = sand.u32 %s99, 1
          %s582 = scalar_lea.sflag [#allocation3], %s581
          %s583 = sand.u32 %s99, 1
          %s584 = smul.addr %s583, 32
          %s585 = scalar_lea.vmem [#allocation2], %s584
          %586 = dma.done %s582, 512
        $region44: #{tpu_custom_call.1} parent=39 // pred_fallthru
          _
      $region40: #{tpu_custom_call.1} parent=5 // pred_fallthru
        _
    $region6: #{tpu_custom_call.1} parent=1 // loop_footer
      %s16 = sadd.s32 1, %s12
    $region7: #{tpu_custom_call.1} parent=1 // loop_footer_branch
      %11 = sbr.rel target = $region3
    $region8: #{tpu_custom_call.1} parent=1 // loop_exit
      _
    %587 = vsyncpa [#allocation3], 1
    %s588 = scalar_lea.sflag [#allocation3], 1
    %589 = vsyncpa %s588, 1

</llo_original>
